<compile_context>
chip_gen: v7x
topology: tpu7x:2x2x1
jax: 0.10.0
libtpu: 0.0.40
codegen_flags: <defaults>
</compile_context>

<pallas_src>
import functools

import jax
import jax.numpy as jnp
from jax.experimental import pallas as pl
from jax.experimental.pallas import tpu as pltpu


def _round_up(x, m):
    return (x + m - 1) // m * m


def _pick_row_tile(tm, M, Kx, O, vmem_budget_bytes):
    """Largest multiple-of-8 row tile <= tm that fits the VMEM budget and,
    when the problem allows, leaves >= 2 grid tiles (megacore sharding)."""
    tm = max(8, (int(tm) // 8) * 8)
    tm = min(tm, _round_up(M, 8))
    # Prefer at least two tiles so a 2-TensorCore chip can shard the row axis.
    if tm > 8 and _round_up(M, tm) // tm < 2:
        tm = max(8, _round_up((tm + 1) // 2, 8))

    def tile_bytes(t):
        # worst-case: f32 buffers, lane-padded slabs, double-buffered streams
        o_lanes = max(_round_up(O, 128), 128)
        k_lanes = max(_round_up(Kx, 128), 128)
        return 2 * t * (k_lanes + o_lanes) * 4

    while tile_bytes(tm) > vmem_budget_bytes and tm > 8:
        tm = max(8, _round_up(tm // 2, 8))
    return tm


def _cpmumoe_kernel(x_ref, w0_ref, w1_ref, w2t_ref, o_ref, *, compute_dtype):
    # x_ref  : (TM, Kx)  rows [a0 | z | 1] for this tile          (compute_dtype)
    # w0_ref : (Kx, R)   W0 zero-extended to full K height        (compute_dtype)
    # w1_ref : (Kx, R)   W1 zero-extended to full K height        (compute_dtype)
    # w2t_ref: (R, O)    W2 pre-transposed (lane-dense RHS)       (compute_dtype)
    # o_ref  : (TM, O)
    x = x_ref[...]
    f1 = jnp.dot(x, w0_ref[...], preferred_element_type=jnp.float32)
    fin = jnp.dot(x, w1_ref[...], preferred_element_type=jnp.float32)
    h = (f1 * fin).astype(compute_dtype)       # CP fusion in f32, back to MXU dtype
    out = jnp.dot(h, w2t_ref[...], preferred_element_type=jnp.float32)
    o_ref[...] = out.astype(o_ref.dtype)


def cpmumoe_forward(z, a0, w0, w1, w2, *, tm=1024,
                    compute_dtype=jnp.bfloat16,
                    vmem_budget_bytes=16 * 1024 * 1024):
    """z: (B,T,I); a0: (B,T,N1); w0: (N1,R); w1: (I+1,R); w2: (O,R)."""
    # TODO(synk): hierarchy=2 path (second expert factor) would add one more
    # zero-extended (Kx, R) weight and one more elementwise factor; not done.
    B, T, I = z.shape
    N1 = a0.shape[-1]
    R = w0.shape[-1]
    O = w2.shape[0]
    assert w1.shape == (I + 1, R), "expects the use_bias=True factor layout"

    M = B * T
    Kx = N1 + I + 1                                   # [a0 | z | 1]

    # Fused activation slab: bias folded as a ones column (== torch.cat ones).
    x = jnp.concatenate(
        [a0.reshape(M, N1), z.reshape(M, I), jnp.ones((M, 1), z.dtype)],
        axis=-1)

    # Zero-extended factor weights so the kernel needs no lane slicing:
    #   x @ w0_full == a0 @ W0        (rows [:N1] carry W0)
    #   x @ w1_full == [z | 1] @ W1   (rows [N1:] carry W1)
    w0_full = jnp.zeros((Kx, R), w0.dtype).at[:N1, :].set(w0)
    w1_full = jnp.zeros((Kx, R), w1.dtype).at[N1:, :].set(w1)

    w2t = w2.T                                        # (R, O), lane-dense RHS

    tm = _pick_row_tile(tm, M, Kx, O, vmem_budget_bytes)
    M_pad = _round_up(M, tm)
    if M_pad != M:
        x = jnp.concatenate(
            [x, jnp.zeros((M_pad - M, Kx), x.dtype)], axis=0)

    grid = (M_pad // tm,)
    out = pl.pallas_call(
        functools.partial(_cpmumoe_kernel, compute_dtype=compute_dtype),
        out_shape=jax.ShapeDtypeStruct((M_pad, O), z.dtype),
        grid_spec=pl.GridSpec(
            grid=grid,
            in_specs=[
                pl.BlockSpec((tm, Kx), lambda i: (i, 0)),     # activations
                pl.BlockSpec((Kx, R), lambda i: (0, 0)),      # W0 (zero-extended)
                pl.BlockSpec((Kx, R), lambda i: (0, 0)),      # W1 (zero-extended)
                pl.BlockSpec((R, O), lambda i: (0, 0)),       # W2^T
            ],
            out_specs=pl.BlockSpec((tm, O), lambda i: (i, 0)),
        ),
        compiler_params=pltpu.CompilerParams(
            dimension_semantics=("parallel",)),
    )(x.astype(compute_dtype), w0_full.astype(compute_dtype),
      w1_full.astype(compute_dtype), w2t.astype(compute_dtype))

    return out[:M].reshape(B, T, O)


def _reference(z, a0, w0, w1, w2):
    B, T, I = z.shape
    z_aug = jnp.concatenate([z, jnp.ones((B, T, 1), z.dtype)], axis=-1)
    f1 = jnp.einsum("btn,nr->btr", a0, w0)
    final = jnp.einsum("bti,ir->btr", z_aug, w1)
    return jnp.einsum("btr,btr,or->bto", f1, final, w2)


def _init_params(key, input_dim, output_dim, expert_dims, rank):
    """Deterministic init matching the shapes/distributions of CPMuMoE.__init__."""
    dims = expert_dims + [input_dim + 1, output_dim]
    keys = jax.random.split(key, len(dims))
    factors = []
    for fi, (d, k) in enumerate(zip(dims, keys)):
        if fi < len(expert_dims):
            w = jax.random.normal(k, (d, rank), jnp.float32) * 1.0 + 1.0
        else:
            eff = input_dim if fi == len(dims) - 2 else rank
            lim = (1.0 / eff) ** 0.5
            w = jax.random.uniform(k, (d, rank), jnp.float32, -lim, lim)
        factors.append(w)
    return factors


if __name__ == "__main__":
    # Small shapes consistent with the module's forward (hierarchy=1, use_bias=True).
    B, T = 2, 8
    input_dim, output_dim = 32, 32
    expert_dims = [4]
    rank = 16

    key = jax.random.PRNGKey(0)
    kz, ka, kw = jax.random.split(key, 3)
    z = jax.random.normal(kz, (B, T, input_dim), jnp.float32)
    a0 = jax.nn.softmax(
        jax.random.normal(ka, (B, T, expert_dims[0]), jnp.float32), axis=-1)

    w0, w1, w2 = _init_params(kw, input_dim, output_dim, expert_dims, rank)

    out = cpmumoe_forward(z, a0, w0, w1, w2)
    out = jax.block_until_ready(out)

    ref = _reference(z, a0, w0, w1, w2)
    assert out.shape == (B, T, output_dim)
    # bf16 MXU inputs with f32 accumulation: check normalized max error.
    err = float(jnp.max(jnp.abs(out - ref)) / (jnp.max(jnp.abs(ref)) + 1e-6))
    assert err < 3e-2, f"mismatch vs reference: normalized max err {err}"

    print("KERNEL_OK")
</pallas_src>

<mosaic_0001>
module attributes {stable_mosaic.version = 11 : i64} {
  func.func @_cpmumoe_kernel(%arg0: i32, %arg1: memref<8x37xbf16, #tpu.memory_space<vmem>>, %arg2: memref<37x16xbf16, #tpu.memory_space<vmem>>, %arg3: memref<37x16xbf16, #tpu.memory_space<vmem>>, %arg4: memref<16x32xbf16, #tpu.memory_space<vmem>>, %arg5: memref<8x32xf32, #tpu.memory_space<vmem>>) attributes {dimension_semantics = [#tpu.dimension_semantics<parallel>], iteration_bounds = array<i64: 2>, scalar_prefetch = 0 : i64, scratch_operands = 0 : i64, tpu.core_type = #tpu.core_type<tc>, window_params = [{transform_indices = @transform_0, window_bounds = array<i64: 8, 37>}, {pipeline_mode = #tpu.pipeline_mode<synchronous>, transform_indices = @transform_1, window_bounds = array<i64: 37, 16>}, {pipeline_mode = #tpu.pipeline_mode<synchronous>, transform_indices = @transform_2, window_bounds = array<i64: 37, 16>}, {pipeline_mode = #tpu.pipeline_mode<synchronous>, transform_indices = @transform_3, window_bounds = array<i64: 16, 32>}, {transform_indices = @transform_4, window_bounds = array<i64: 8, 32>}]} {
    %c0 = arith.constant 0 : index
    %c0_0 = arith.constant 0 : index
    %0 = vector.load %arg1[%c0, %c0_0] : memref<8x37xbf16, #tpu.memory_space<vmem>>, vector<8x37xbf16>
    %c0_1 = arith.constant 0 : index
    %c0_2 = arith.constant 0 : index
    %1 = vector.load %arg2[%c0_1, %c0_2] : memref<37x16xbf16, #tpu.memory_space<vmem>>, vector<37x16xbf16>
    %cst = arith.constant dense<0.000000e+00> : vector<8x16xf32>
    %2 = tpu.matmul %0, %1, %cst {dimension_numbers = #tpu.dot_dimension_numbers<[1], [0], [0], [1], [0, 0, 1, 1], [], []>} : vector<8x37xbf16>, vector<37x16xbf16>, vector<8x16xf32> -> vector<8x16xf32>
    %c0_3 = arith.constant 0 : index
    %c0_4 = arith.constant 0 : index
    %3 = vector.load %arg3[%c0_3, %c0_4] : memref<37x16xbf16, #tpu.memory_space<vmem>>, vector<37x16xbf16>
    %cst_5 = arith.constant dense<0.000000e+00> : vector<8x16xf32>
    %4 = tpu.matmul %0, %3, %cst_5 {dimension_numbers = #tpu.dot_dimension_numbers<[1], [0], [0], [1], [0, 0, 1, 1], [], []>} : vector<8x37xbf16>, vector<37x16xbf16>, vector<8x16xf32> -> vector<8x16xf32>
    %5 = arith.mulf %2, %4 : vector<8x16xf32>
    %6 = arith.truncf %5 : vector<8x16xf32> to vector<8x16xbf16>
    %c0_6 = arith.constant 0 : index
    %c0_7 = arith.constant 0 : index
    %7 = vector.load %arg4[%c0_6, %c0_7] : memref<16x32xbf16, #tpu.memory_space<vmem>>, vector<16x32xbf16>
    %cst_8 = arith.constant dense<0.000000e+00> : vector<8x32xf32>
    %8 = tpu.matmul %6, %7, %cst_8 {dimension_numbers = #tpu.dot_dimension_numbers<[1], [0], [0], [1], [0, 0, 1, 1], [], []>} : vector<8x16xbf16>, vector<16x32xbf16>, vector<8x32xf32> -> vector<8x32xf32>
    %c0_9 = arith.constant 0 : index
    %c0_10 = arith.constant 0 : index
    %9 = vector.load %arg5[%c0_9, %c0_10] : memref<8x32xf32, #tpu.memory_space<vmem>>, vector<8x32xf32>
    tpu.vector_store %arg5[%c0_9, %c0_10], %8 {strides = array<i32>} : memref<8x32xf32, #tpu.memory_space<vmem>>, vector<8x32xf32>,
    return
  }
  func.func @transform_0(%arg0: i32) -> (i32, i32) {
    %c0_i32 = arith.constant 0 : i32
    %c0_i32_0 = arith.constant 0 : i32
    return %arg0, %c0_i32 : i32, i32
  }
  func.func @transform_1(%arg0: i32) -> (i32, i32) {
    %c0_i32 = arith.constant 0 : i32
    %c0_i32_0 = arith.constant 0 : i32
    %c0_i32_1 = arith.constant 0 : i32
    return %c0_i32, %c0_i32_0 : i32, i32
  }
  func.func @transform_2(%arg0: i32) -> (i32, i32) {
    %c0_i32 = arith.constant 0 : i32
    %c0_i32_0 = arith.constant 0 : i32
    %c0_i32_1 = arith.constant 0 : i32
    return %c0_i32, %c0_i32_0 : i32, i32
  }
  func.func @transform_3(%arg0: i32) -> (i32, i32) {
    %c0_i32 = arith.constant 0 : i32
    %c0_i32_0 = arith.constant 0 : i32
    %c0_i32_1 = arith.constant 0 : i32
    return %c0_i32, %c0_i32_0 : i32, i32
  }
  func.func @transform_4(%arg0: i32) -> (i32, i32) {
    %c0_i32 = arith.constant 0 : i32
    %c0_i32_0 = arith.constant 0 : i32
    return %arg0, %c0_i32 : i32, i32
  }
}

</mosaic_0001>

<llo_original>
// kernel: tpu_custom_call.1
$region0: #{tpu_custom_call.1}
  #allocation0 [shape = 'u32[]', space=smem, size = 0x4, offset = 0x4, fixed_abs, tag = 'smem constant byte address 0x4 - core index']
  #allocation1 [shape = 'u32[144,128]{1,0:T(1,128)}', space=vmem, size = 0x12000, scoped, tag = 'internal scratch']
  %s0 = inlined_call_operand.vmem [shape: bf16[16,37], index: 0, kind: input, shape index: {}]
  %s1 = inlined_call_operand.vmem [shape: bf16[37,16], index: 1, kind: input, shape index: {}]
  %s2 = inlined_call_operand.vmem [shape: bf16[37,16], index: 2, kind: input, shape index: {}]
  %s3 = inlined_call_operand.vmem [shape: bf16[16,32], index: 3, kind: input, shape index: {}]
  %s4 = inlined_call_operand.hbm [shape: f32[16,32], index: 4, kind: output, shape index: {}]
  %s5 = sld [smem:[#allocation0]]
  $region49: #{tpu_custom_call.1} parent=0
    _
  %s7 = ssub.s32 1, %s5
  %s8 = scalar_select 0, %s7, %s5
  $region1: #{tpu_custom_call.1} parent=0
    #allocation2 [shape = 'u8[8192]{0}', space=vmem, size = 0x2000, scoped, tag = 'output window, operand 0']
    #allocation3 [shape = 's32[2]{0}', space=sflag, size = 0x8, scoped, tag = 'scoped memory for tpu_custom_call.1']
    %9 = vsyncpa [#allocation3], 0
    %s10 = scalar_lea.sflag [#allocation3], 1
    %11 = vsyncpa %s10, 0
    loop: start=0, step=1, limit=4
    $region2: #{tpu_custom_call.1} parent=1 // loop_pre_header
      _
    $region3: #{tpu_custom_call.1} parent=1 // loop_header
      %s13 = sphi 0, %s17
      %p14 = scmp.ge.s32.totalorder %s13, 4
      %s23 = sphi 0, %s25
      %s26 = sphi 0, %s23
      %s27 = sphi 0, %s26
      %s43 = sphi 0, %s27
      %s47 = sphi 0, %s47
      %s49 = sphi 0, %s47
      %s50 = sphi 0, %s49
      %s64 = sphi 0, %s50
      %s68 = sphi 0, %s68
      %s70 = sphi 0, %s68
      %s71 = sphi 0, %s70
      %s85 = sphi 0, %s71
      %s89 = sphi 0, %s89
      %s91 = sphi 0, %s89
      %s92 = sphi 0, %s91
      %s106 = sphi 0, %s92
      %s112 = sphi 0, %s114
      %s115 = sphi 0, %s112
      %s116 = sphi 0, %s115
      %s132 = sphi 0, %s116
    $region4: #{tpu_custom_call.1} parent=1 // loop_header_branch
      %16 = sbr.rel (%p14) target = $region8
    $region5: #{tpu_custom_call.1} parent=1 // loop_body
      %s18 = ssub.s32 %s13, 1
      %s19 = ssub.s32 %s13, 2
      %s20 = sadd.s32 %s13, 1
      %s21 = ssub.s32 %s13, %s20
      %p22 = scmp.eq.s32.totalorder %s21, 0
      %s24 = sadd.s32 %s23, 1
      %s25 = scalar_select %p22, %s23, %s24
      %p28 = pneg %p22
      %p29 = scmp.eq.s32.totalorder %s13, 1
      %p30 = por %p28, %p29
      %p31 = scmp.ne.s32.totalorder %s23, %s26
      %p32 = scmp.eq.s32.totalorder %s13, 0
      %p33 = por %p31, %p32
      %p34 = scmp.ne.s32.totalorder %s23, %s26
      %p35 = scmp.eq.s32.totalorder %s18, 1
      %p36 = por %p34, %p35
      %p37 = scmp.ne.s32.totalorder %s26, %s27
      %p38 = scmp.eq.s32.totalorder %s18, 0
      %p39 = por %p37, %p38
      %p40 = scmp.ne.s32.totalorder %s26, %s27
      %p41 = scmp.eq.s32.totalorder %s19, 1
      %p42 = por %p40, %p41
      %p44 = scmp.ne.s32.totalorder %s27, %s43
      %p45 = scmp.eq.s32.totalorder %s19, 0
      %p46 = por %p44, %p45
      %s48 = sadd.s32 %s47, 1
      %p51 = scmp.eq.s32.totalorder %s13, 1
      %p52 = scmp.ne.s32.totalorder %s47, %s49
      %p53 = scmp.eq.s32.totalorder %s13, 0
      %p54 = por %p52, %p53
      %p55 = scmp.ne.s32.totalorder %s47, %s49
      %p56 = scmp.eq.s32.totalorder %s18, 1
      %p57 = por %p55, %p56
      %p58 = scmp.ne.s32.totalorder %s49, %s50
      %p59 = scmp.eq.s32.totalorder %s18, 0
      %p60 = por %p58, %p59
      %p61 = scmp.ne.s32.totalorder %s49, %s50
      %p62 = scmp.eq.s32.totalorder %s19, 1
      %p63 = por %p61, %p62
      %p65 = scmp.ne.s32.totalorder %s50, %s64
      %p66 = scmp.eq.s32.totalorder %s19, 0
      %p67 = por %p65, %p66
      %s69 = sadd.s32 %s68, 1
      %p72 = scmp.eq.s32.totalorder %s13, 1
      %p73 = scmp.ne.s32.totalorder %s68, %s70
      %p74 = scmp.eq.s32.totalorder %s13, 0
      %p75 = por %p73, %p74
      %p76 = scmp.ne.s32.totalorder %s68, %s70
      %p77 = scmp.eq.s32.totalorder %s18, 1
      %p78 = por %p76, %p77
      %p79 = scmp.ne.s32.totalorder %s70, %s71
      %p80 = scmp.eq.s32.totalorder %s18, 0
      %p81 = por %p79, %p80
      %p82 = scmp.ne.s32.totalorder %s70, %s71
      %p83 = scmp.eq.s32.totalorder %s19, 1
      %p84 = por %p82, %p83
      %p86 = scmp.ne.s32.totalorder %s71, %s85
      %p87 = scmp.eq.s32.totalorder %s19, 0
      %p88 = por %p86, %p87
      %s90 = sadd.s32 %s89, 1
      %p93 = scmp.eq.s32.totalorder %s13, 1
      %p94 = scmp.ne.s32.totalorder %s89, %s91
      %p95 = scmp.eq.s32.totalorder %s13, 0
      %p96 = por %p94, %p95
      %p97 = scmp.ne.s32.totalorder %s89, %s91
      %p98 = scmp.eq.s32.totalorder %s18, 1
      %p99 = por %p97, %p98
      %p100 = scmp.ne.s32.totalorder %s91, %s92
      %p101 = scmp.eq.s32.totalorder %s18, 0
      %p102 = por %p100, %p101
      %p103 = scmp.ne.s32.totalorder %s91, %s92
      %p104 = scmp.eq.s32.totalorder %s19, 1
      %p105 = por %p103, %p104
      %p107 = scmp.ne.s32.totalorder %s92, %s106
      %p108 = scmp.eq.s32.totalorder %s19, 0
      %p109 = por %p107, %p108
      %s110 = ssub.s32 %s13, %s20
      %p111 = scmp.eq.s32.totalorder %s110, 0
      %s113 = sadd.s32 %s112, 1
      %s114 = scalar_select %p111, %s112, %s113
      %p117 = pneg %p111
      %p118 = scmp.eq.s32.totalorder %s13, 1
      %p119 = por %p117, %p118
      %p120 = scmp.ne.s32.totalorder %s112, %s115
      %p121 = scmp.eq.s32.totalorder %s13, 0
      %p122 = por %p120, %p121
      %p123 = scmp.ne.s32.totalorder %s112, %s115
      %p124 = scmp.eq.s32.totalorder %s18, 1
      %p125 = por %p123, %p124
      %p126 = scmp.ne.s32.totalorder %s115, %s116
      %p127 = scmp.eq.s32.totalorder %s18, 0
      %p128 = por %p126, %p127
      %p129 = scmp.ne.s32.totalorder %s115, %s116
      %p130 = scmp.eq.s32.totalorder %s19, 1
      %p131 = por %p129, %p130
      %p133 = scmp.ne.s32.totalorder %s116, %s132
      %p134 = scmp.eq.s32.totalorder %s19, 0
      %p135 = por %p133, %p134
      %p136 = scmp.le.s32.totalorder 1, %s13
      %p137 = scmp.lt.s32.totalorder %s13, 3
      %p138 = pnand %p136, %p137
      %p139 = pneg %p138
      // Predicated region
      $region9: #{tpu_custom_call.1} parent=5 // pred_check
        _
      $region10: #{tpu_custom_call.1} parent=5 // pred_check_branch
        %141 = sbr.rel (%p138) target = $region12
      $region11: #{tpu_custom_call.1} parent=5 // pred_region
        %s142 = ssub.s32 %s13, 1
        // Predicated region
        $region13: #{tpu_custom_call.1} parent=11 // pred_check
          %p143 = pneg %p60
        $region14: #{tpu_custom_call.1} parent=11 // pred_check_branch
          %145 = sbr.rel (%p143) target = $region16
        $region15: #{tpu_custom_call.1} parent=11 // pred_region
          _
        $region16: #{tpu_custom_call.1} parent=11 // pred_fallthru
          _
        // Predicated region
        $region17: #{tpu_custom_call.1} parent=11 // pred_check
          %p146 = pneg %p81
        $region18: #{tpu_custom_call.1} parent=11 // pred_check_branch
          %148 = sbr.rel (%p146) target = $region20
        $region19: #{tpu_custom_call.1} parent=11 // pred_region
          _
        $region20: #{tpu_custom_call.1} parent=11 // pred_fallthru
          _
        // Predicated region
        $region21: #{tpu_custom_call.1} parent=11 // pred_check
          %p149 = pneg %p102
        $region22: #{tpu_custom_call.1} parent=11 // pred_check_branch
          %151 = sbr.rel (%p149) target = $region24
        $region23: #{tpu_custom_call.1} parent=11 // pred_region
          _
        $region24: #{tpu_custom_call.1} parent=11 // pred_fallthru
          _
      $region12: #{tpu_custom_call.1} parent=5 // pred_fallthru
        _
      %p152 = scmp.lt.s32.totalorder %s13, 2
      // Predicated region
      $region25: #{tpu_custom_call.1} parent=5 // pred_check
        %p153 = pneg %p152
      $region26: #{tpu_custom_call.1} parent=5 // pred_check_branch
        %155 = sbr.rel (%p153) target = $region28
      $region27: #{tpu_custom_call.1} parent=5 // pred_region
        // Predicated region
        $region29: #{tpu_custom_call.1} parent=27 // pred_check
          %p156 = pneg %p33
        $region30: #{tpu_custom_call.1} parent=27 // pred_check_branch
          %158 = sbr.rel (%p156) target = $region32
        $region31: #{tpu_custom_call.1} parent=27 // pred_region
          %p159 = scmp.lt.s32.totalorder %s13, 1
          %s160 = scalar_select %p159, %s13, 1
          %s161 = smul.addr %s160, 4
          %s162 = scalar_lea.vmem %s0, %s161
        $region32: #{tpu_custom_call.1} parent=27 // pred_fallthru
          _
      $region28: #{tpu_custom_call.1} parent=5 // pred_fallthru
        _
      %p163 = scmp.le.s32.totalorder 1, %s13
      %p164 = scmp.lt.s32.totalorder %s13, 3
      %p165 = pnand %p163, %p164
      %p166 = pneg %p165
      // Predicated region
      $region33: #{tpu_custom_call.1} parent=5 // pred_check
        _
      $region34: #{tpu_custom_call.1} parent=5 // pred_check_branch
        %168 = sbr.rel (%p165) target = $region36
      $region35: #{tpu_custom_call.1} parent=5 // pred_region
        %s169 = ssub.s32 %s13, 1
        %p170 = scmp.lt.s32.totalorder %s18, 1
        %s171 = scalar_select %p170, %s18, 1
        %s172 = smul.addr %s171, 4
        %s173 = scalar_lea.vmem %s0, %s172
        %p174 = pneg %p39
        %p175 = pneg %p36
        %p176 = pneg %p60
        %p177 = pneg %p57
        %p178 = pneg %p81
        %p179 = pneg %p78
        %p180 = pneg %p102
        %p181 = pneg %p99
        %p182 = pneg %p128
        %p183 = pneg %p125
        %s184 = sand.u32 %s115, 1
        %s185 = scalar_lea.sflag [#allocation3], %s184
        %s186 = sand.u32 %s115, 1
        %s187 = smul.addr %s186, 8
        %s188 = scalar_lea.vmem [#allocation2], %s187
        %p189 = scmp.lt.s32.totalorder %s18, 1
        %s190 = scalar_select %p189, %s18, 1
        %s191 = smul.addr %s190, 4
        %s192 = scalar_lea.vmem %s0, %s191
        %v194 = vld [vmem:[%s192] sm:$0xf]
        %v195 = vld [vmem:[%s1] sm:$0xf]
        %v196 = vld [vmem:[%s1 + $0x4] sm:$0xf]
        %v197 = vld [vmem:[%s1 + $0x8] sm:$0xf]
        %v198 = vld [vmem:[%s1 + $0xc] sm:$0xf]
        %v199 = vld [vmem:[%s1 + $0x10] sm:$0x7]
        %v205 = vunpack.c.l.b16 %v195
        %v206 = vunpack.c.l.b16 %v196
        %v207 = vunpack.c.l.b16 %v197
        %v208 = vunpack.c.l.b16 %v198
        %v209 = vunpack.c.l.b16 %v199
        %v210 = vpack.c.b16 %v206, %v205
        %v211 = vpack.c.b16 %v208, %v207
        %v212 = vpack.c.b16 %v209, %v209
        %vm215 = vcmask 302080
        %v217 = vsel %vm215, %v194, 0
        %vm219 = vcmask 1041408
        %vm220 = vcmask 1042432
        %v221 = vsel %vm219, 4294967295, 65535
        %v222 = vsel %vm220, %v221, 0
        %v224 = vand.u32 %v212, %v222
        %226 = vmatprep.subr.bf16.mxu0 0
        %227 = vmatpush1.bf16.msra.mxu0 %v210
        %228 = vmatprep.subr.bf16.mxu0 0
        %229 = vmatpush1.bf16.msra.mxu0 %v211
        %230 = vmatprep.subr.bf16.mxu0 0
        %231 = vmatpush1.bf16.msra.mxu0 %v224
        %232 = vmatprep.subr.bf16.mxu0 0
        %233 = vmatpush1.bf16.msra.mxu0 0
        %234 = vmatprep.subr.bf16.mxu0 0
        %235 = vmatpush1.bf16.msra.mxu0 0
        %236 = vmatprep.subr.bf16.mxu0 0
        %237 = vmatpush1.bf16.msra.mxu0 0
        %238 = vmatprep.subr.bf16.mxu0 0
        %239 = vmatpush1.bf16.msra.mxu0 0
        %240 = vmatprep.subr.bf16.mxu0 0
        %241 = vmatpush1.bf16.msra.mxu0 0
        %242 = vmatprep.subr.bf16.mxu0 0
        %243 = vmatpush1.bf16.msra.mxu0 0
        %244 = vmatprep.subr.bf16.mxu0 0
        %245 = vmatpush1.bf16.msra.mxu0 0
        %246 = vmatprep.subr.bf16.mxu0 0
        %247 = vmatpush1.bf16.msra.mxu0 0
        %248 = vmatprep.subr.bf16.mxu0 0
        %249 = vmatpush1.bf16.msra.mxu0 0
        %250 = vmatprep.subr.bf16.mxu0 0
        %251 = vmatpush1.bf16.msra.mxu0 0
        %252 = vmatprep.subr.bf16.mxu0 0
        %253 = vmatpush1.bf16.msra.mxu0 0
        %254 = vmatprep.subr.bf16.mxu0 0
        %255 = vmatpush1.bf16.msra.mxu0 0
        %256 = vmatprep.subr.bf16.mxu0 0
        %257 = vmatpush1.bf16.msra.mxu0 0
        %258 = vmatprep.mubr.bf16.mxu0 0
        %259 = vmatmul.mubr.bf16.gmra.mrb[0].mxu0 %v217
        %v260 = vpop.f32.mrb[0].mxu0
        %v261 = vadd.f32 0.0, %v260
        %v262 = vpop.f32.mrb[0].mxu0
        %v263 = vpop.f32.mrb[0].mxu0
        %v264 = vpop.f32.mrb[0].mxu0
        %265 = vdwg.mxu0
        %v266 = vld [vmem:[%s2] sm:$0xf]
        %v267 = vld [vmem:[%s2 + $0x4] sm:$0xf]
        %v268 = vld [vmem:[%s2 + $0x8] sm:$0xf]
        %v269 = vld [vmem:[%s2 + $0xc] sm:$0xf]
        %v270 = vld [vmem:[%s2 + $0x10] sm:$0x7]
        %v276 = vunpack.c.l.b16 %v266
        %v277 = vunpack.c.l.b16 %v267
        %v278 = vunpack.c.l.b16 %v268
        %v279 = vunpack.c.l.b16 %v269
        %v280 = vunpack.c.l.b16 %v270
        %v281 = vpack.c.b16 %v277, %v276
        %v282 = vpack.c.b16 %v279, %v278
        %v283 = vpack.c.b16 %v280, %v280
        %v287 = vand.u32 %v283, %v222
        %289 = vmatprep.subr.bf16.mxu0 0
        %290 = vmatpush1.bf16.msra.mxu0 %v281
        %291 = vmatprep.subr.bf16.mxu0 0
        %292 = vmatpush1.bf16.msra.mxu0 %v282
        %293 = vmatprep.subr.bf16.mxu0 0
        %294 = vmatpush1.bf16.msra.mxu0 %v287
        %295 = vmatprep.subr.bf16.mxu0 0
        %296 = vmatpush1.bf16.msra.mxu0 0
        %297 = vmatprep.subr.bf16.mxu0 0
        %298 = vmatpush1.bf16.msra.mxu0 0
        %299 = vmatprep.subr.bf16.mxu0 0
        %300 = vmatpush1.bf16.msra.mxu0 0
        %301 = vmatprep.subr.bf16.mxu0 0
        %302 = vmatpush1.bf16.msra.mxu0 0
        %303 = vmatprep.subr.bf16.mxu0 0
        %304 = vmatpush1.bf16.msra.mxu0 0
        %305 = vmatprep.subr.bf16.mxu0 0
        %306 = vmatpush1.bf16.msra.mxu0 0
        %307 = vmatprep.subr.bf16.mxu0 0
        %308 = vmatpush1.bf16.msra.mxu0 0
        %309 = vmatprep.subr.bf16.mxu0 0
        %310 = vmatpush1.bf16.msra.mxu0 0
        %311 = vmatprep.subr.bf16.mxu0 0
        %312 = vmatpush1.bf16.msra.mxu0 0
        %313 = vmatprep.subr.bf16.mxu0 0
        %314 = vmatpush1.bf16.msra.mxu0 0
        %315 = vmatprep.subr.bf16.mxu0 0
        %316 = vmatpush1.bf16.msra.mxu0 0
        %317 = vmatprep.subr.bf16.mxu0 0
        %318 = vmatpush1.bf16.msra.mxu0 0
        %319 = vmatprep.subr.bf16.mxu0 0
        %320 = vmatpush1.bf16.msra.mxu0 0
        %321 = vmatprep.mubr.bf16.mxu0 0
        %322 = vmatmul.mubr.bf16.gmra.mrb[0].mxu0 %v217
        %v323 = vpop.f32.mrb[0].mxu0
        %v324 = vadd.f32 0.0, %v323
        %v325 = vpop.f32.mrb[0].mxu0
        %v326 = vpop.f32.mrb[0].mxu0
        %v327 = vpop.f32.mrb[0].mxu0
        %328 = vdwg.mxu0
        %v329 = vmul.f32 %v261, %v324
        %v330 = vpack.c.bf16 %v329, %v329
        %v331 = vld [vmem:[%s3] sm:$0xf]
        %v332 = vld [vmem:[%s3 + $0x4] sm:$0xf]
        %v335 = vunpack.c.l.b16 %v331
        %v336 = vunpack.c.l.b16 %v332
        %v337 = vpack.c.b16 %v336, %v335
        %vm339 = vcmask 130048
        %v341 = vsel %vm339, %v330, 0
        %343 = vmatprep.subr.bf16.mxu0 0
        %344 = vmatpush1.bf16.msra.mxu0 %v337
        %345 = vmatprep.subr.bf16.mxu0 0
        %346 = vmatpush1.bf16.msra.mxu0 0
        %347 = vmatprep.subr.bf16.mxu0 0
        %348 = vmatpush1.bf16.msra.mxu0 0
        %349 = vmatprep.subr.bf16.mxu0 0
        %350 = vmatpush1.bf16.msra.mxu0 0
        %351 = vmatprep.subr.bf16.mxu0 0
        %352 = vmatpush1.bf16.msra.mxu0 0
        %353 = vmatprep.subr.bf16.mxu0 0
        %354 = vmatpush1.bf16.msra.mxu0 0
        %355 = vmatprep.subr.bf16.mxu0 0
        %356 = vmatpush1.bf16.msra.mxu0 0
        %357 = vmatprep.subr.bf16.mxu0 0
        %358 = vmatpush1.bf16.msra.mxu0 0
        %359 = vmatprep.subr.bf16.mxu0 0
        %360 = vmatpush1.bf16.msra.mxu0 0
        %361 = vmatprep.subr.bf16.mxu0 0
        %362 = vmatpush1.bf16.msra.mxu0 0
        %363 = vmatprep.subr.bf16.mxu0 0
        %364 = vmatpush1.bf16.msra.mxu0 0
        %365 = vmatprep.subr.bf16.mxu0 0
        %366 = vmatpush1.bf16.msra.mxu0 0
        %367 = vmatprep.subr.bf16.mxu0 0
        %368 = vmatpush1.bf16.msra.mxu0 0
        %369 = vmatprep.subr.bf16.mxu0 0
        %370 = vmatpush1.bf16.msra.mxu0 0
        %371 = vmatprep.subr.bf16.mxu0 0
        %372 = vmatpush1.bf16.msra.mxu0 0
        %373 = vmatprep.subr.bf16.mxu0 0
        %374 = vmatpush1.bf16.msra.mxu0 0
        %375 = vmatprep.mubr.bf16.mxu0 0
        %376 = vmatmul.mubr.bf16.gmra.mrb[0].mxu0 %v341
        %v377 = vpop.f32.mrb[0].mxu0
        %v378 = vadd.f32 0.0, %v377
        %v379 = vpop.f32.mrb[0].mxu0
        %v380 = vpop.f32.mrb[0].mxu0
        %v381 = vpop.f32.mrb[0].mxu0
        %382 = vdwg.mxu0
        %vm383 = vcmask 261120
        %384 = vst.msk [vmem:[%s188] sm:$0xff] %vm383, %v378
        %s385 = sand.u32 %s115, 1
        %s386 = scalar_lea.sflag [#allocation3], %s385
        %s387 = sand.u32 %s115, 1
        %s388 = smul.addr %s387, 8
        %s389 = scalar_lea.vmem [#allocation2], %s388
        // Predicated region
        $region37: #{tpu_custom_call.1} parent=35 // pred_check
          %p390 = pneg %p125
        $region38: #{tpu_custom_call.1} parent=35 // pred_check_branch
          %392 = sbr.rel (%p390) target = $region40
        $region39: #{tpu_custom_call.1} parent=35 // pred_region
          %s394 = ssub.s32 128, 128
          %395 = vsyncadd %s386, %s394
          %s396 = smul.addr %s18, 128
          %s397 = scalar_lea.hbm %s4, %s396
          %s399 = sshll.u32 %s389, 4
          %s400 = int_to_ptr.vmem [resolvable:$true] %s399
          %402 = dma.vmem_to_hbm [thread:$0]  %s400, 128, %s397, %s386
        $region40: #{tpu_custom_call.1} parent=35 // pred_fallthru
          _
      $region36: #{tpu_custom_call.1} parent=5 // pred_fallthru
        _
      %p403 = scmp.le.s32.totalorder 2, %s13
      // Predicated region
      $region41: #{tpu_custom_call.1} parent=5 // pred_check
        %p404 = pneg %p403
      $region42: #{tpu_custom_call.1} parent=5 // pred_check_branch
        %406 = sbr.rel (%p404) target = $region44
      $region43: #{tpu_custom_call.1} parent=5 // pred_region
        %s407 = ssub.s32 %s13, 2
        // Predicated region
        $region45: #{tpu_custom_call.1} parent=43 // pred_check
          %p408 = pneg %p131
        $region46: #{tpu_custom_call.1} parent=43 // pred_check_branch
          %410 = sbr.rel (%p408) target = $region48
        $region47: #{tpu_custom_call.1} parent=43 // pred_region
          %s411 = sand.u32 %s116, 1
          %s412 = scalar_lea.sflag [#allocation3], %s411
          %s413 = sand.u32 %s116, 1
          %s414 = smul.addr %s413, 8
          %s415 = scalar_lea.vmem [#allocation2], %s414
          %416 = dma.done %s412, 128
        $region48: #{tpu_custom_call.1} parent=43 // pred_fallthru
          _
      $region44: #{tpu_custom_call.1} parent=5 // pred_fallthru
        _
    $region6: #{tpu_custom_call.1} parent=1 // loop_footer
      %s17 = sadd.s32 1, %s13
    $region7: #{tpu_custom_call.1} parent=1 // loop_footer_branch
      %12 = sbr.rel target = $region3
    $region8: #{tpu_custom_call.1} parent=1 // loop_exit
      _
    %417 = vsyncpa [#allocation3], 1
    %s418 = scalar_lea.sflag [#allocation3], 1
    %419 = vsyncpa %s418, 1

</llo_original>
